<compile_context>
chip_gen: v7x
topology: tpu7x:2x2x1
jax: 0.10.0
libtpu: 0.0.40
codegen_flags: <defaults>
</compile_context>

<pallas_src>
import functools

import jax
import jax.numpy as jnp
from jax.experimental import pallas as pl
from jax.experimental.pallas import tpu as pltpu

D_IN = 100
D_IN_PAD = 128        # latent dim padded to a full 128-lane vreg (clean K)
D_H1 = 128
D_H2 = 256
D_OUT = 28 * 28       # 784 (true output width; equals full array dim)


def _generator_kernel(x_ref, w1_ref, b1_ref, w2_ref, b2_ref, w3_ref, b3_ref,
                      o_ref):
    x = x_ref[...]                                           # (bm, 128) bf16

    # Layer 1: Linear(100 -> 128) + ReLU  (zero-padded w1 rows are inert).
    h1 = jnp.dot(x, w1_ref[...], preferred_element_type=jnp.float32)
    h1 = jnp.maximum(h1 + b1_ref[...], 0.0)

    # Layer 2: Linear(128 -> 256) + ReLU.
    h2 = jnp.dot(h1.astype(jnp.bfloat16), w2_ref[...],
                 preferred_element_type=jnp.float32)
    h2 = jnp.maximum(h2 + b2_ref[...], 0.0)

    # Layer 3: Linear(256 -> 784) + Sigmoid.
    logits = jnp.dot(h2.astype(jnp.bfloat16), w3_ref[...],
                     preferred_element_type=jnp.float32)
    logits = logits + b3_ref[...]
    # Single-transcendental sigmoid: sigmoid(x) = 0.5*tanh(x/2) + 0.5 (EUP).
    o_ref[...] = (0.5 * jnp.tanh(0.5 * logits) + 0.5).astype(o_ref.dtype)


def _pick_bm(batch):
    """Batch tile size.

    Large tiles amortize the ~0.35 us/grid-step overhead; an even step count
    lets the "parallel" batch axis shard cleanly across v7x's two TensorCores;
    the padding cap avoids wasting more than half a tile on padded rows.
    """
    for even_only in (True, False):
        for bm in (1024, 512, 256, 128):
            steps = -(-batch // bm)
            pad = steps * bm - batch
            if steps >= 2 and pad <= bm // 2 and (steps % 2 == 0 or not even_only):
                return bm
    if batch > 16:
        # Medium batch that would otherwise be a single tile: split in two so
        # both v7x TensorCores get work (harmless on v5e/v6e).
        half = -(-batch // 2)
        return -(-half // 8) * 8
    # Tiny batch: one sublane-aligned tile.
    return max(8, -(-batch // 8) * 8)


def prepare_params(params):
    """One-time weight prep (hoist out of the per-call path).

    PyTorch (out,in) -> (in,out) transpose, latent K zero-pad 100->128, and
    bf16 cast for the MXU.  Biases stay f32 (added to the f32 accumulator).
    """
    w1 = jnp.zeros((D_IN_PAD, D_H1), jnp.float32)
    w1 = w1.at[:D_IN, :].set(params["w1"].T.astype(jnp.float32))
    w1 = w1.astype(jnp.bfloat16)                              # (128, 128)
    w2 = params["w2"].T.astype(jnp.bfloat16)                  # (128, 256)
    w3 = params["w3"].T.astype(jnp.bfloat16)                  # (256, 784)
    b1 = params["b1"].astype(jnp.float32)[None, :]            # (1, 128)
    b2 = params["b2"].astype(jnp.float32)[None, :]            # (1, 256)
    b3 = params["b3"].astype(jnp.float32)[None, :]            # (1, 784)
    return (w1, b1, w2, b2, w3, b3)


@functools.partial(jax.jit, static_argnames=("bm",))
def generator_forward(x, prepped, *, bm=None):
    """x: (B, 100) latent noise. prepped: output of prepare_params()."""
    B, in_dim = x.shape
    assert in_dim == D_IN
    w1, b1, w2, b2, w3, b3 = prepped

    if bm is None:
        bm = _pick_bm(B)
    b_pad = -(-B // bm) * bm                    # batch rounded up to the tile

    # Pad input batch and latent dim (zeros are inert vs. zero-padded w1 rows).
    x_p = jnp.zeros((b_pad, D_IN_PAD), jnp.bfloat16)
    x_p = x_p.at[:B, :D_IN].set(x.astype(jnp.bfloat16))

    grid = (b_pad // bm,)

    def rep(shape):
        # Full-array block, replicated across the batch grid axis.
        return pl.BlockSpec(shape, lambda i: (0,) * len(shape))

    flops = 2 * b_pad * (D_IN_PAD * D_H1 + D_H1 * D_H2 + D_H2 * D_OUT)
    bytes_accessed = (2 * (x_p.size + w1.size + w2.size + w3.size)       # bf16
                      + 4 * (b1.size + b2.size + b3.size + b_pad * D_OUT))  # f32
    cost = pl.CostEstimate(flops=flops,
                           transcendentals=b_pad * D_OUT,
                           bytes_accessed=bytes_accessed)

    out_p = pl.pallas_call(
        _generator_kernel,
        out_shape=jax.ShapeDtypeStruct((b_pad, D_OUT), jnp.float32),
        grid_spec=pltpu.PrefetchScalarGridSpec(
            num_scalar_prefetch=0,
            grid=grid,
            in_specs=[
                pl.BlockSpec((bm, D_IN_PAD), lambda i: (i, 0)),   # x batch tile
                rep(w1.shape), rep(b1.shape),
                rep(w2.shape), rep(b2.shape),
                rep(w3.shape), rep(b3.shape),
            ],
            out_specs=pl.BlockSpec((bm, D_OUT), lambda i: (i, 0)),
        ),
        compiler_params=pltpu.CompilerParams(
            dimension_semantics=("parallel",),
            vmem_limit_bytes=32 * 1024 * 1024),
        cost_estimate=cost,
    )(x_p, w1, b1, w2, b2, w3, b3)

    # Strip only the batch padding; output width is already the true 784.
    return out_p[:B, :]


def init_params(key):
    """Deterministic synthetic params with PyTorch nn.Linear shapes."""
    ks = jax.random.split(key, 6)

    def lin(kw, kb, fan_in, fan_out):
        bound = 1.0 / jnp.sqrt(fan_in)
        w = jax.random.uniform(kw, (fan_out, fan_in), jnp.float32, -bound, bound)
        b = jax.random.uniform(kb, (fan_out,), jnp.float32, -bound, bound)
        return w, b

    w1, b1 = lin(ks[0], ks[1], 100, 128)
    w2, b2 = lin(ks[2], ks[3], 128, 256)
    w3, b3 = lin(ks[4], ks[5], 256, 28 * 28)
    return dict(w1=w1, b1=b1, w2=w2, b2=b2, w3=w3, b3=b3)


def _reference(x, p):
    h1 = jnp.maximum(x @ p["w1"].T + p["b1"], 0.0)
    h2 = jnp.maximum(h1 @ p["w2"].T + p["b2"], 0.0)
    return jax.nn.sigmoid(h2 @ p["w3"].T + p["b3"])


if __name__ == "__main__":
    key = jax.random.PRNGKey(0)
    kx, kp = jax.random.split(key)
    B = 8
    x = jax.random.normal(kx, (B, 100), jnp.float32)  # latent noise z
    params = init_params(kp)
    prepped = prepare_params(params)                  # one-time weight prep

    out = generator_forward(x, prepped)
    out = jax.block_until_ready(out)

    ref = _reference(x, params)
    assert out.shape == (B, D_OUT)
    # bf16 MXU matmuls with f32 accumulation: slightly relaxed vs. pure f32.
    err = float(jnp.max(jnp.abs(out - ref)))
    assert err < 3e-3, f"max abs error {err}"

    print("KERNEL_OK")
</pallas_src>

<mosaic_0001>
module attributes {stable_mosaic.version = 11 : i64} {
  func.func @_generator_kernel(%arg0: i32, %arg1: memref<8x128xbf16, #tpu.memory_space<vmem>>, %arg2: memref<128x128xbf16, #tpu.memory_space<vmem>>, %arg3: memref<1x128xf32, #tpu.memory_space<vmem>>, %arg4: memref<128x256xbf16, #tpu.memory_space<vmem>>, %arg5: memref<1x256xf32, #tpu.memory_space<vmem>>, %arg6: memref<256x784xbf16, #tpu.memory_space<vmem>>, %arg7: memref<1x784xf32, #tpu.memory_space<vmem>>, %arg8: memref<8x784xf32, #tpu.memory_space<vmem>>) attributes {dimension_semantics = [#tpu.dimension_semantics<parallel>], iteration_bounds = array<i64: 1>, scalar_prefetch = 0 : i64, scratch_operands = 0 : i64, tpu.core_type = #tpu.core_type<tc>, window_params = [{transform_indices = @transform_0, window_bounds = array<i64: 8, 128>}, {pipeline_mode = #tpu.pipeline_mode<synchronous>, transform_indices = @transform_1, window_bounds = array<i64: 128, 128>}, {pipeline_mode = #tpu.pipeline_mode<synchronous>, transform_indices = @transform_2, window_bounds = array<i64: 1, 128>}, {pipeline_mode = #tpu.pipeline_mode<synchronous>, transform_indices = @transform_3, window_bounds = array<i64: 128, 256>}, {pipeline_mode = #tpu.pipeline_mode<synchronous>, transform_indices = @transform_4, window_bounds = array<i64: 1, 256>}, {pipeline_mode = #tpu.pipeline_mode<synchronous>, transform_indices = @transform_5, window_bounds = array<i64: 256, 784>}, {pipeline_mode = #tpu.pipeline_mode<synchronous>, transform_indices = @transform_6, window_bounds = array<i64: 1, 784>}, {transform_indices = @transform_7, window_bounds = array<i64: 8, 784>}]} {
    %c0 = arith.constant 0 : index
    %c0_0 = arith.constant 0 : index
    %0 = vector.load %arg1[%c0, %c0_0] : memref<8x128xbf16, #tpu.memory_space<vmem>>, vector<8x128xbf16>
    %c0_1 = arith.constant 0 : index
    %c0_2 = arith.constant 0 : index
    %1 = vector.load %arg2[%c0_1, %c0_2] : memref<128x128xbf16, #tpu.memory_space<vmem>>, vector<128x128xbf16>
    %cst = arith.constant dense<0.000000e+00> : vector<8x128xf32>
    %2 = tpu.matmul %0, %1, %cst {dimension_numbers = #tpu.dot_dimension_numbers<[1], [0], [0], [1], [0, 0, 1, 1], [], []>} : vector<8x128xbf16>, vector<128x128xbf16>, vector<8x128xf32> -> vector<8x128xf32>
    %c0_3 = arith.constant 0 : index
    %c0_4 = arith.constant 0 : index
    %3 = vector.load %arg3[%c0_3, %c0_4] : memref<1x128xf32, #tpu.memory_space<vmem>>, vector<1x128xf32>
    %4 = vector.broadcast %3 : vector<1x128xf32> to vector<8x128xf32>
    %5 = arith.addf %2, %4 : vector<8x128xf32>
    %cst_5 = arith.constant 0.000000e+00 : f32
    %6 = vector.broadcast %cst_5 : f32 to vector<8x128xf32>
    %7 = arith.maximumf %5, %6 : vector<8x128xf32>
    %8 = arith.truncf %7 : vector<8x128xf32> to vector<8x128xbf16>
    %c0_6 = arith.constant 0 : index
    %c0_7 = arith.constant 0 : index
    %9 = vector.load %arg4[%c0_6, %c0_7] : memref<128x256xbf16, #tpu.memory_space<vmem>>, vector<128x256xbf16>
    %cst_8 = arith.constant dense<0.000000e+00> : vector<8x256xf32>
    %10 = tpu.matmul %8, %9, %cst_8 {dimension_numbers = #tpu.dot_dimension_numbers<[1], [0], [0], [1], [0, 0, 1, 1], [], []>} : vector<8x128xbf16>, vector<128x256xbf16>, vector<8x256xf32> -> vector<8x256xf32>
    %c0_9 = arith.constant 0 : index
    %c0_10 = arith.constant 0 : index
    %11 = vector.load %arg5[%c0_9, %c0_10] : memref<1x256xf32, #tpu.memory_space<vmem>>, vector<1x256xf32>
    %12 = vector.broadcast %11 : vector<1x256xf32> to vector<8x256xf32>
    %13 = arith.addf %10, %12 : vector<8x256xf32>
    %cst_11 = arith.constant 0.000000e+00 : f32
    %14 = vector.broadcast %cst_11 : f32 to vector<8x256xf32>
    %15 = arith.maximumf %13, %14 : vector<8x256xf32>
    %16 = arith.truncf %15 : vector<8x256xf32> to vector<8x256xbf16>
    %c0_12 = arith.constant 0 : index
    %c0_13 = arith.constant 0 : index
    %17 = vector.load %arg6[%c0_12, %c0_13] : memref<256x784xbf16, #tpu.memory_space<vmem>>, vector<256x784xbf16>
    %cst_14 = arith.constant dense<0.000000e+00> : vector<8x784xf32>
    %18 = tpu.matmul %16, %17, %cst_14 {dimension_numbers = #tpu.dot_dimension_numbers<[1], [0], [0], [1], [0, 0, 1, 1], [], []>} : vector<8x256xbf16>, vector<256x784xbf16>, vector<8x784xf32> -> vector<8x784xf32>
    %c0_15 = arith.constant 0 : index
    %c0_16 = arith.constant 0 : index
    %19 = vector.load %arg7[%c0_15, %c0_16] : memref<1x784xf32, #tpu.memory_space<vmem>>, vector<1x784xf32>
    %20 = vector.broadcast %19 : vector<1x784xf32> to vector<8x784xf32>
    %21 = arith.addf %18, %20 : vector<8x784xf32>
    %cst_17 = arith.constant 5.000000e-01 : f32
    %22 = vector.broadcast %cst_17 : f32 to vector<8x784xf32>
    %23 = arith.mulf %22, %21 : vector<8x784xf32>
    %24 = math.tanh %23 : vector<8x784xf32>
    %cst_18 = arith.constant 5.000000e-01 : f32
    %25 = vector.broadcast %cst_18 : f32 to vector<8x784xf32>
    %26 = arith.mulf %25, %24 : vector<8x784xf32>
    %cst_19 = arith.constant 5.000000e-01 : f32
    %27 = vector.broadcast %cst_19 : f32 to vector<8x784xf32>
    %28 = arith.addf %26, %27 : vector<8x784xf32>
    %c0_20 = arith.constant 0 : index
    %c0_21 = arith.constant 0 : index
    %29 = vector.load %arg8[%c0_20, %c0_21] : memref<8x784xf32, #tpu.memory_space<vmem>>, vector<8x784xf32>
    tpu.vector_store %arg8[%c0_20, %c0_21], %28 {strides = array<i32>} : memref<8x784xf32, #tpu.memory_space<vmem>>, vector<8x784xf32>,
    return
  }
  func.func @transform_0(%arg0: i32) -> (i32, i32) {
    %c0_i32 = arith.constant 0 : i32
    %c0_i32_0 = arith.constant 0 : i32
    return %arg0, %c0_i32 : i32, i32
  }
  func.func @transform_1(%arg0: i32) -> (i32, i32) {
    %c0_i32 = arith.constant 0 : i32
    %c0_i32_0 = arith.constant 0 : i32
    %c0_i32_1 = arith.constant 0 : i32
    return %c0_i32, %c0_i32_0 : i32, i32
  }
  func.func @transform_2(%arg0: i32) -> (i32, i32) {
    %c0_i32 = arith.constant 0 : i32
    %c0_i32_0 = arith.constant 0 : i32
    %c0_i32_1 = arith.constant 0 : i32
    return %c0_i32, %c0_i32_0 : i32, i32
  }
  func.func @transform_3(%arg0: i32) -> (i32, i32) {
    %c0_i32 = arith.constant 0 : i32
    %c0_i32_0 = arith.constant 0 : i32
    %c0_i32_1 = arith.constant 0 : i32
    return %c0_i32, %c0_i32_0 : i32, i32
  }
  func.func @transform_4(%arg0: i32) -> (i32, i32) {
    %c0_i32 = arith.constant 0 : i32
    %c0_i32_0 = arith.constant 0 : i32
    %c0_i32_1 = arith.constant 0 : i32
    return %c0_i32, %c0_i32_0 : i32, i32
  }
  func.func @transform_5(%arg0: i32) -> (i32, i32) {
    %c0_i32 = arith.constant 0 : i32
    %c0_i32_0 = arith.constant 0 : i32
    %c0_i32_1 = arith.constant 0 : i32
    return %c0_i32, %c0_i32_0 : i32, i32
  }
  func.func @transform_6(%arg0: i32) -> (i32, i32) {
    %c0_i32 = arith.constant 0 : i32
    %c0_i32_0 = arith.constant 0 : i32
    %c0_i32_1 = arith.constant 0 : i32
    return %c0_i32, %c0_i32_0 : i32, i32
  }
  func.func @transform_7(%arg0: i32) -> (i32, i32) {
    %c0_i32 = arith.constant 0 : i32
    %c0_i32_0 = arith.constant 0 : i32
    return %arg0, %c0_i32 : i32, i32
  }
}

</mosaic_0001>

<llo_original>
// kernel: generator_forward.1
$region0: #{generator_forward.1}
  #allocation0 [shape = 'u32[]', space=smem, size = 0x4, offset = 0x4, fixed_abs, tag = 'smem constant byte address 0x4 - core index']
  #allocation1 [shape = 'u32[144,128]{1,0:T(1,128)}', space=vmem, size = 0x12000, scoped, tag = 'internal scratch']
  %s0 = inlined_call_operand.vmem [shape: bf16[8,128], index: 0, kind: input, shape index: {}]
  %s1 = inlined_call_operand.vmem [shape: bf16[128,128], index: 1, kind: input, shape index: {}]
  %s2 = inlined_call_operand.vmem [shape: f32[1,128], index: 2, kind: input, shape index: {}]
  %s3 = inlined_call_operand.vmem [shape: bf16[128,256], index: 3, kind: input, shape index: {}]
  %s4 = inlined_call_operand.vmem [shape: f32[1,256], index: 4, kind: input, shape index: {}]
  %s5 = inlined_call_operand.vmem [shape: bf16[256,784], index: 5, kind: input, shape index: {}]
  %s6 = inlined_call_operand.vmem [shape: f32[1,784], index: 6, kind: input, shape index: {}]
  %s7 = inlined_call_operand.hbm [shape: f32[8,784], index: 7, kind: output, shape index: {}]
  %s8 = sld [smem:[#allocation0]]
  $region38: #{generator_forward.1} parent=0
    _
  %s10 = ssub.s32 1, %s8
  %s11 = scalar_select 0, %s10, %s8
  $region1: #{generator_forward.1} parent=0
    #allocation2 [shape = 'u8[28672]{0}', space=vmem, size = 0x7000, scoped, tag = 'output window, operand 0, single buffered']
    #allocation3 [shape = 's32[1]{0}', space=sflag, size = 0x4, scoped, tag = 'scoped memory for generator_forward.1']
    %12 = vsyncpa [#allocation3], 0
    // Predicated region
    $region2: #{generator_forward.1} parent=1 // pred_check
      _
    $region3: #{generator_forward.1} parent=1 // pred_check_branch
      %14 = sbr.rel (0) target = $region5
    $region4: #{generator_forward.1} parent=1 // pred_region
      _
    $region5: #{generator_forward.1} parent=1 // pred_fallthru
      _
    // Predicated region
    $region6: #{generator_forward.1} parent=1 // pred_check
      _
    $region7: #{generator_forward.1} parent=1 // pred_check_branch
      %16 = sbr.rel (0) target = $region9
    $region8: #{generator_forward.1} parent=1 // pred_region
      _
    $region9: #{generator_forward.1} parent=1 // pred_fallthru
      _
    // Predicated region
    $region10: #{generator_forward.1} parent=1 // pred_check
      _
    $region11: #{generator_forward.1} parent=1 // pred_check_branch
      %18 = sbr.rel (0) target = $region13
    $region12: #{generator_forward.1} parent=1 // pred_region
      _
    $region13: #{generator_forward.1} parent=1 // pred_fallthru
      _
    // Predicated region
    $region14: #{generator_forward.1} parent=1 // pred_check
      _
    $region15: #{generator_forward.1} parent=1 // pred_check_branch
      %20 = sbr.rel (0) target = $region17
    $region16: #{generator_forward.1} parent=1 // pred_region
      _
    $region17: #{generator_forward.1} parent=1 // pred_fallthru
      _
    // Predicated region
    $region18: #{generator_forward.1} parent=1 // pred_check
      _
    $region19: #{generator_forward.1} parent=1 // pred_check_branch
      %22 = sbr.rel (0) target = $region21
    $region20: #{generator_forward.1} parent=1 // pred_region
      _
    $region21: #{generator_forward.1} parent=1 // pred_fallthru
      _
    // Predicated region
    $region22: #{generator_forward.1} parent=1 // pred_check
      _
    $region23: #{generator_forward.1} parent=1 // pred_check_branch
      %24 = sbr.rel (0) target = $region25
    $region24: #{generator_forward.1} parent=1 // pred_region
      _
    $region25: #{generator_forward.1} parent=1 // pred_fallthru
      _
    // Predicated region
    $region26: #{generator_forward.1} parent=1 // pred_check
      _
    $region27: #{generator_forward.1} parent=1 // pred_check_branch
      %26 = sbr.rel (0) target = $region29
    $region28: #{generator_forward.1} parent=1 // pred_region
      _
    $region29: #{generator_forward.1} parent=1 // pred_fallthru
      _
    %v28 = vld [vmem:[%s0] sm:$0xf]
    %v29 = vld [vmem:[%s1] sm:$0xf]
    %v30 = vld [vmem:[%s1 + $0x4] sm:$0xf]
    %v31 = vld [vmem:[%s1 + $0x8] sm:$0xf]
    %v32 = vld [vmem:[%s1 + $0xc] sm:$0xf]
    %v33 = vld [vmem:[%s1 + $0x10] sm:$0xf]
    %v34 = vld [vmem:[%s1 + $0x14] sm:$0xf]
    %v35 = vld [vmem:[%s1 + $0x18] sm:$0xf]
    %v36 = vld [vmem:[%s1 + $0x1c] sm:$0xf]
    %v37 = vld [vmem:[%s1 + $0x20] sm:$0xf]
    %v38 = vld [vmem:[%s1 + $0x24] sm:$0xf]
    %v39 = vld [vmem:[%s1 + $0x28] sm:$0xf]
    %v40 = vld [vmem:[%s1 + $0x2c] sm:$0xf]
    %v41 = vld [vmem:[%s1 + $0x30] sm:$0xf]
    %v42 = vld [vmem:[%s1 + $0x34] sm:$0xf]
    %v43 = vld [vmem:[%s1 + $0x38] sm:$0xf]
    %v44 = vld [vmem:[%s1 + $0x3c] sm:$0xf]
    %v45 = vld [vmem:[%s2] sm:$0x1]
    %v47 = vlaneseq
    %v48 = vshrl.u32 %v47, 7
    %v49 = vsub.s32 0, %v48
    %v50 = vrot.slane %v45, %v49
    %v68 = vunpack.c.l.b16 %v29
    %v69 = vunpack.c.l.b16 %v30
    %v70 = vunpack.c.l.b16 %v31
    %v71 = vunpack.c.l.b16 %v32
    %v72 = vunpack.c.l.b16 %v33
    %v73 = vunpack.c.l.b16 %v34
    %v74 = vunpack.c.l.b16 %v35
    %v75 = vunpack.c.l.b16 %v36
    %v76 = vunpack.c.l.b16 %v37
    %v77 = vunpack.c.l.b16 %v38
    %v78 = vunpack.c.l.b16 %v39
    %v79 = vunpack.c.l.b16 %v40
    %v80 = vunpack.c.l.b16 %v41
    %v81 = vunpack.c.l.b16 %v42
    %v82 = vunpack.c.l.b16 %v43
    %v83 = vunpack.c.l.b16 %v44
    %v84 = vpack.c.b16 %v69, %v68
    %v85 = vpack.c.b16 %v71, %v70
    %v86 = vpack.c.b16 %v73, %v72
    %v87 = vpack.c.b16 %v75, %v74
    %v88 = vpack.c.b16 %v77, %v76
    %v89 = vpack.c.b16 %v79, %v78
    %v90 = vpack.c.b16 %v81, %v80
    %v91 = vpack.c.b16 %v83, %v82
    %100 = vmatprep.subr.bf16.mxu0 0
    %101 = vmatpush1.bf16.msra.mxu0 %v84
    %102 = vmatprep.subr.bf16.mxu0 0
    %103 = vmatpush1.bf16.msra.mxu0 %v85
    %104 = vmatprep.subr.bf16.mxu0 0
    %105 = vmatpush1.bf16.msra.mxu0 %v86
    %106 = vmatprep.subr.bf16.mxu0 0
    %107 = vmatpush1.bf16.msra.mxu0 %v87
    %108 = vmatprep.subr.bf16.mxu0 0
    %109 = vmatpush1.bf16.msra.mxu0 %v88
    %110 = vmatprep.subr.bf16.mxu0 0
    %111 = vmatpush1.bf16.msra.mxu0 %v89
    %112 = vmatprep.subr.bf16.mxu0 0
    %113 = vmatpush1.bf16.msra.mxu0 %v90
    %114 = vmatprep.subr.bf16.mxu0 0
    %115 = vmatpush1.bf16.msra.mxu0 %v91
    %116 = vmatprep.subr.bf16.mxu0 0
    %117 = vmatpush1.bf16.msra.mxu0 0
    %118 = vmatprep.subr.bf16.mxu0 0
    %119 = vmatpush1.bf16.msra.mxu0 0
    %120 = vmatprep.subr.bf16.mxu0 0
    %121 = vmatpush1.bf16.msra.mxu0 0
    %122 = vmatprep.subr.bf16.mxu0 0
    %123 = vmatpush1.bf16.msra.mxu0 0
    %124 = vmatprep.subr.bf16.mxu0 0
    %125 = vmatpush1.bf16.msra.mxu0 0
    %126 = vmatprep.subr.bf16.mxu0 0
    %127 = vmatpush1.bf16.msra.mxu0 0
    %128 = vmatprep.subr.bf16.mxu0 0
    %129 = vmatpush1.bf16.msra.mxu0 0
    %130 = vmatprep.subr.bf16.mxu0 0
    %131 = vmatpush1.bf16.msra.mxu0 0
    %132 = vmatprep.mubr.bf16.mxu0 0
    %133 = vmatmul.mubr.bf16.gmra.mrb[0].mxu0 %v28
    %v134 = vpop.f32.mrb[0].mxu0
    %v135 = vadd.f32 %v50, %v134
    %v136 = vpop.f32.mrb[0].mxu0
    %v137 = vpop.f32.mrb[0].mxu0
    %v138 = vpop.f32.mrb[0].mxu0
    %139 = vdwg.mxu0
    %v140 = vmax.f32 %v135, 0.0
    %v141 = vpack.c.bf16 %v140, %v140
    %v142 = vld [vmem:[%s3] sm:$0xff]
    %v143 = vld [vmem:[%s3 + $0x8] sm:$0xff]
    %v144 = vld [vmem:[%s3 + $0x10] sm:$0xff]
    %v145 = vld [vmem:[%s3 + $0x18] sm:$0xff]
    %v146 = vld [vmem:[%s3 + $0x20] sm:$0xff]
    %v147 = vld [vmem:[%s3 + $0x28] sm:$0xff]
    %v148 = vld [vmem:[%s3 + $0x30] sm:$0xff]
    %v149 = vld [vmem:[%s3 + $0x38] sm:$0xff]
    %v150 = vld [vmem:[%s3 + $0x40] sm:$0xff]
    %v151 = vld [vmem:[%s3 + $0x48] sm:$0xff]
    %v152 = vld [vmem:[%s3 + $0x50] sm:$0xff]
    %v153 = vld [vmem:[%s3 + $0x58] sm:$0xff]
    %v154 = vld [vmem:[%s3 + $0x60] sm:$0xff]
    %v155 = vld [vmem:[%s3 + $0x68] sm:$0xff]
    %v156 = vld [vmem:[%s3 + $0x70] sm:$0xff]
    %v157 = vld [vmem:[%s3 + $0x78] sm:$0xff]
    %v158 = vld [vmem:[%s4] sm:$0x3]
    %v160 = vlaneseq
    %v161 = vshrl.u32 %v160, 7
    %v162 = vsub.s32 0, %v161
    %v163 = vrot.slane %v158, %v162
    %v164 = vlaneseq
    %v165 = vshrl.u32 %v164, 7
    %v166 = vsub.s32 1, %v165
    %v167 = vrot.slane %v158, %v166
    %v186 = vunpack.c.l.b16 %v142
    %v187 = vunpack.c.h.b16 %v142
    %v188 = vunpack.c.l.b16 %v143
    %v189 = vunpack.c.h.b16 %v143
    %v190 = vunpack.c.l.b16 %v144
    %v191 = vunpack.c.h.b16 %v144
    %v192 = vunpack.c.l.b16 %v145
    %v193 = vunpack.c.h.b16 %v145
    %v194 = vunpack.c.l.b16 %v146
    %v195 = vunpack.c.h.b16 %v146
    %v196 = vunpack.c.l.b16 %v147
    %v197 = vunpack.c.h.b16 %v147
    %v198 = vunpack.c.l.b16 %v148
    %v199 = vunpack.c.h.b16 %v148
    %v200 = vunpack.c.l.b16 %v149
    %v201 = vunpack.c.h.b16 %v149
    %v202 = vunpack.c.l.b16 %v150
    %v203 = vunpack.c.h.b16 %v150
    %v204 = vunpack.c.l.b16 %v151
    %v205 = vunpack.c.h.b16 %v151
    %v206 = vunpack.c.l.b16 %v152
    %v207 = vunpack.c.h.b16 %v152
    %v208 = vunpack.c.l.b16 %v153
    %v209 = vunpack.c.h.b16 %v153
    %v210 = vunpack.c.l.b16 %v154
    %v211 = vunpack.c.h.b16 %v154
    %v212 = vunpack.c.l.b16 %v155
    %v213 = vunpack.c.h.b16 %v155
    %v214 = vunpack.c.l.b16 %v156
    %v215 = vunpack.c.h.b16 %v156
    %v216 = vunpack.c.l.b16 %v157
    %v217 = vunpack.c.h.b16 %v157
    %v218 = vpack.c.b16 %v188, %v186
    %v219 = vpack.c.b16 %v189, %v187
    %v220 = vpack.c.b16 %v192, %v190
    %v221 = vpack.c.b16 %v193, %v191
    %v222 = vpack.c.b16 %v196, %v194
    %v223 = vpack.c.b16 %v197, %v195
    %v224 = vpack.c.b16 %v200, %v198
    %v225 = vpack.c.b16 %v201, %v199
    %v226 = vpack.c.b16 %v204, %v202
    %v227 = vpack.c.b16 %v205, %v203
    %v228 = vpack.c.b16 %v208, %v206
    %v229 = vpack.c.b16 %v209, %v207
    %v230 = vpack.c.b16 %v212, %v210
    %v231 = vpack.c.b16 %v213, %v211
    %v232 = vpack.c.b16 %v216, %v214
    %v233 = vpack.c.b16 %v217, %v215
    %250 = vmatprep.subr.bf16.mxu0 %v219
    %251 = vmatpush1.bf16.msra.mxu0 %v218
    %252 = vmatprep.subr.bf16.mxu0 %v221
    %253 = vmatpush1.bf16.msra.mxu0 %v220
    %254 = vmatprep.subr.bf16.mxu0 %v223
    %255 = vmatpush1.bf16.msra.mxu0 %v222
    %256 = vmatprep.subr.bf16.mxu0 %v225
    %257 = vmatpush1.bf16.msra.mxu0 %v224
    %258 = vmatprep.subr.bf16.mxu0 %v227
    %259 = vmatpush1.bf16.msra.mxu0 %v226
    %260 = vmatprep.subr.bf16.mxu0 %v229
    %261 = vmatpush1.bf16.msra.mxu0 %v228
    %262 = vmatprep.subr.bf16.mxu0 %v231
    %263 = vmatpush1.bf16.msra.mxu0 %v230
    %264 = vmatprep.subr.bf16.mxu0 %v233
    %265 = vmatpush1.bf16.msra.mxu0 %v232
    %266 = vmatprep.subr.bf16.mxu0 0
    %267 = vmatpush1.bf16.msra.mxu0 0
    %268 = vmatprep.subr.bf16.mxu0 0
    %269 = vmatpush1.bf16.msra.mxu0 0
    %270 = vmatprep.subr.bf16.mxu0 0
    %271 = vmatpush1.bf16.msra.mxu0 0
    %272 = vmatprep.subr.bf16.mxu0 0
    %273 = vmatpush1.bf16.msra.mxu0 0
    %274 = vmatprep.subr.bf16.mxu0 0
    %275 = vmatpush1.bf16.msra.mxu0 0
    %276 = vmatprep.subr.bf16.mxu0 0
    %277 = vmatpush1.bf16.msra.mxu0 0
    %278 = vmatprep.subr.bf16.mxu0 0
    %279 = vmatpush1.bf16.msra.mxu0 0
    %280 = vmatprep.subr.bf16.mxu0 0
    %281 = vmatpush1.bf16.msra.mxu0 0
    %282 = vmatprep.mubr.bf16.mxu0 0
    %283 = vmatmul.mubr.bf16.gmra.mrb[0].mxu0 %v141
    %v284 = vpop.f32.mrb[0].mxu0
    %v285 = vadd.f32 %v163, %v284
    %v286 = vpop.f32.mrb[0].mxu0
    %v287 = vadd.f32 %v167, %v286
    %v288 = vpop.f32.mrb[0].mxu0
    %v289 = vpop.f32.mrb[0].mxu0
    %290 = vdwg.mxu0
    %v291 = vmax.f32 %v285, 0.0
    %v292 = vmax.f32 %v287, 0.0
    %v293 = vpack.c.bf16 %v291, %v291
    %v294 = vpack.c.bf16 %v292, %v292
    %v295 = vld [vmem:[%s5] sm:$0xff]
    %v296 = vld [vmem:[%s5 + $0x8] sm:$0xff]
    %v297 = vld [vmem:[%s5 + $0x10] sm:$0xff]
    %v298 = vld [vmem:[%s5 + $0x18] sm:$0xf]
    %v299 = vld [vmem:[%s5 + $0x1c] sm:$0xff]
    %v300 = vld [vmem:[%s5 + $0x24] sm:$0xff]
    %v301 = vld [vmem:[%s5 + $0x2c] sm:$0xff]
    %v302 = vld [vmem:[%s5 + $0x34] sm:$0xf]
    %v303 = vld [vmem:[%s5 + $0x38] sm:$0xff]
    %v304 = vld [vmem:[%s5 + $0x40] sm:$0xff]
    %v305 = vld [vmem:[%s5 + $0x48] sm:$0xff]
    %v306 = vld [vmem:[%s5 + $0x50] sm:$0xf]
    %v307 = vld [vmem:[%s5 + $0x54] sm:$0xff]
    %v308 = vld [vmem:[%s5 + $0x5c] sm:$0xff]
    %v309 = vld [vmem:[%s5 + $0x64] sm:$0xff]
    %v310 = vld [vmem:[%s5 + $0x6c] sm:$0xf]
    %v311 = vld [vmem:[%s5 + $0x70] sm:$0xff]
    %v312 = vld [vmem:[%s5 + $0x78] sm:$0xff]
    %v313 = vld [vmem:[%s5 + $0x80] sm:$0xff]
    %v314 = vld [vmem:[%s5 + $0x88] sm:$0xf]
    %v315 = vld [vmem:[%s5 + $0x8c] sm:$0xff]
    %v316 = vld [vmem:[%s5 + $0x94] sm:$0xff]
    %v317 = vld [vmem:[%s5 + $0x9c] sm:$0xff]
    %v318 = vld [vmem:[%s5 + $0xa4] sm:$0xf]
    %v319 = vld [vmem:[%s5 + $0xa8] sm:$0xff]
    %v320 = vld [vmem:[%s5 + $0xb0] sm:$0xff]
    %v321 = vld [vmem:[%s5 + $0xb8] sm:$0xff]
    %v322 = vld [vmem:[%s5 + $0xc0] sm:$0xf]
    %v323 = vld [vmem:[%s5 + $0xc4] sm:$0xff]
    %v324 = vld [vmem:[%s5 + $0xcc] sm:$0xff]
    %v325 = vld [vmem:[%s5 + $0xd4] sm:$0xff]
    %v326 = vld [vmem:[%s5 + $0xdc] sm:$0xf]
    %v327 = vld [vmem:[%s5 + $0xe0] sm:$0xff]
    %v328 = vld [vmem:[%s5 + $0xe8] sm:$0xff]
    %v329 = vld [vmem:[%s5 + $0xf0] sm:$0xff]
    %v330 = vld [vmem:[%s5 + $0xf8] sm:$0xf]
    %v331 = vld [vmem:[%s5 + $0xfc] sm:$0xff]
    %v332 = vld [vmem:[%s5 + $0x104] sm:$0xff]
    %v333 = vld [vmem:[%s5 + $0x10c] sm:$0xff]
    %v334 = vld [vmem:[%s5 + $0x114] sm:$0xf]
    %v335 = vld [vmem:[%s5 + $0x118] sm:$0xff]
    %v336 = vld [vmem:[%s5 + $0x120] sm:$0xff]
    %v337 = vld [vmem:[%s5 + $0x128] sm:$0xff]
    %v338 = vld [vmem:[%s5 + $0x130] sm:$0xf]
    %v339 = vld [vmem:[%s5 + $0x134] sm:$0xff]
    %v340 = vld [vmem:[%s5 + $0x13c] sm:$0xff]
    %v341 = vld [vmem:[%s5 + $0x144] sm:$0xff]
    %v342 = vld [vmem:[%s5 + $0x14c] sm:$0xf]
    %v343 = vld [vmem:[%s5 + $0x150] sm:$0xff]
    %v344 = vld [vmem:[%s5 + $0x158] sm:$0xff]
    %v345 = vld [vmem:[%s5 + $0x160] sm:$0xff]
    %v346 = vld [vmem:[%s5 + $0x168] sm:$0xf]
    %v347 = vld [vmem:[%s5 + $0x16c] sm:$0xff]
    %v348 = vld [vmem:[%s5 + $0x174] sm:$0xff]
    %v349 = vld [vmem:[%s5 + $0x17c] sm:$0xff]
    %v350 = vld [vmem:[%s5 + $0x184] sm:$0xf]
    %v351 = vld [vmem:[%s5 + $0x188] sm:$0xff]
    %v352 = vld [vmem:[%s5 + $0x190] sm:$0xff]
    %v353 = vld [vmem:[%s5 + $0x198] sm:$0xff]
    %v354 = vld [vmem:[%s5 + $0x1a0] sm:$0xf]
    %v355 = vld [vmem:[%s5 + $0x1a4] sm:$0xff]
    %v356 = vld [vmem:[%s5 + $0x1ac] sm:$0xff]
    %v357 = vld [vmem:[%s5 + $0x1b4] sm:$0xff]
    %v358 = vld [vmem:[%s5 + $0x1bc] sm:$0xf]
    %v359 = vld [vmem:[%s5 + $0x1c0] sm:$0xff]
    %v360 = vld [vmem:[%s5 + $0x1c8] sm:$0xff]
    %v361 = vld [vmem:[%s5 + $0x1d0] sm:$0xff]
    %v362 = vld [vmem:[%s5 + $0x1d8] sm:$0xf]
    %v363 = vld [vmem:[%s5 + $0x1dc] sm:$0xff]
    %v364 = vld [vmem:[%s5 + $0x1e4] sm:$0xff]
    %v365 = vld [vmem:[%s5 + $0x1ec] sm:$0xff]
    %v366 = vld [vmem:[%s5 + $0x1f4] sm:$0xf]
    %v367 = vld [vmem:[%s5 + $0x1f8] sm:$0xff]
    %v368 = vld [vmem:[%s5 + $0x200] sm:$0xff]
    %v369 = vld [vmem:[%s5 + $0x208] sm:$0xff]
    %v370 = vld [vmem:[%s5 + $0x210] sm:$0xf]
    %v371 = vld [vmem:[%s5 + $0x214] sm:$0xff]
    %v372 = vld [vmem:[%s5 + $0x21c] sm:$0xff]
    %v373 = vld [vmem:[%s5 + $0x224] sm:$0xff]
    %v374 = vld [vmem:[%s5 + $0x22c] sm:$0xf]
    %v375 = vld [vmem:[%s5 + $0x230] sm:$0xff]
    %v376 = vld [vmem:[%s5 + $0x238] sm:$0xff]
    %v377 = vld [vmem:[%s5 + $0x240] sm:$0xff]
    %v378 = vld [vmem:[%s5 + $0x248] sm:$0xf]
    %v379 = vld [vmem:[%s5 + $0x24c] sm:$0xff]
    %v380 = vld [vmem:[%s5 + $0x254] sm:$0xff]
    %v381 = vld [vmem:[%s5 + $0x25c] sm:$0xff]
    %v382 = vld [vmem:[%s5 + $0x264] sm:$0xf]
    %v383 = vld [vmem:[%s5 + $0x268] sm:$0xff]
    %v384 = vld [vmem:[%s5 + $0x270] sm:$0xff]
    %v385 = vld [vmem:[%s5 + $0x278] sm:$0xff]
    %v386 = vld [vmem:[%s5 + $0x280] sm:$0xf]
    %v387 = vld [vmem:[%s5 + $0x284] sm:$0xff]
    %v388 = vld [vmem:[%s5 + $0x28c] sm:$0xff]
    %v389 = vld [vmem:[%s5 + $0x294] sm:$0xff]
    %v390 = vld [vmem:[%s5 + $0x29c] sm:$0xf]
    %v391 = vld [vmem:[%s5 + $0x2a0] sm:$0xff]
    %v392 = vld [vmem:[%s5 + $0x2a8] sm:$0xff]
    %v393 = vld [vmem:[%s5 + $0x2b0] sm:$0xff]
    %v394 = vld [vmem:[%s5 + $0x2b8] sm:$0xf]
    %v395 = vld [vmem:[%s5 + $0x2bc] sm:$0xff]
    %v396 = vld [vmem:[%s5 + $0x2c4] sm:$0xff]
    %v397 = vld [vmem:[%s5 + $0x2cc] sm:$0xff]
    %v398 = vld [vmem:[%s5 + $0x2d4] sm:$0xf]
    %v399 = vld [vmem:[%s5 + $0x2d8] sm:$0xff]
    %v400 = vld [vmem:[%s5 + $0x2e0] sm:$0xff]
    %v401 = vld [vmem:[%s5 + $0x2e8] sm:$0xff]
    %v402 = vld [vmem:[%s5 + $0x2f0] sm:$0xf]
    %v403 = vld [vmem:[%s5 + $0x2f4] sm:$0xff]
    %v404 = vld [vmem:[%s5 + $0x2fc] sm:$0xff]
    %v405 = vld [vmem:[%s5 + $0x304] sm:$0xff]
    %v406 = vld [vmem:[%s5 + $0x30c] sm:$0xf]
    %v407 = vld [vmem:[%s5 + $0x310] sm:$0xff]
    %v408 = vld [vmem:[%s5 + $0x318] sm:$0xff]
    %v409 = vld [vmem:[%s5 + $0x320] sm:$0xff]
    %v410 = vld [vmem:[%s5 + $0x328] sm:$0xf]
    %v411 = vld [vmem:[%s5 + $0x32c] sm:$0xff]
    %v412 = vld [vmem:[%s5 + $0x334] sm:$0xff]
    %v413 = vld [vmem:[%s5 + $0x33c] sm:$0xff]
    %v414 = vld [vmem:[%s5 + $0x344] sm:$0xf]
    %v415 = vld [vmem:[%s5 + $0x348] sm:$0xff]
    %v416 = vld [vmem:[%s5 + $0x350] sm:$0xff]
    %v417 = vld [vmem:[%s5 + $0x358] sm:$0xff]
    %v418 = vld [vmem:[%s5 + $0x360] sm:$0xf]
    %v419 = vld [vmem:[%s5 + $0x364] sm:$0xff]
    %v420 = vld [vmem:[%s5 + $0x36c] sm:$0xff]
    %v421 = vld [vmem:[%s5 + $0x374] sm:$0xff]
    %v422 = vld [vmem:[%s5 + $0x37c] sm:$0xf]
    %v423 = vld [vmem:[%s6] sm:$0x7f]
    %v425 = vlaneseq
    %v426 = vshrl.u32 %v425, 7
    %v427 = vsub.s32 0, %v426
    %v428 = vrot.slane %v423, %v427
    %v429 = vlaneseq
    %v430 = vshrl.u32 %v429, 7
    %v431 = vsub.s32 1, %v430
    %v432 = vrot.slane %v423, %v431
    %v433 = vlaneseq
    %v434 = vshrl.u32 %v433, 7
    %v435 = vsub.s32 2, %v434
    %v436 = vrot.slane %v423, %v435
    %v437 = vlaneseq
    %v438 = vshrl.u32 %v437, 7
    %v439 = vsub.s32 3, %v438
    %v440 = vrot.slane %v423, %v439
    %v441 = vlaneseq
    %v442 = vshrl.u32 %v441, 7
    %v443 = vsub.s32 4, %v442
    %v444 = vrot.slane %v423, %v443
    %v445 = vlaneseq
    %v446 = vshrl.u32 %v445, 7
    %v447 = vsub.s32 5, %v446
    %v448 = vrot.slane %v423, %v447
    %v449 = vlaneseq
    %v450 = vshrl.u32 %v449, 7
    %v451 = vsub.s32 6, %v450
    %v452 = vrot.slane %v423, %v451
    %v588 = vunpack.c.l.b16 %v295
    %v589 = vunpack.c.h.b16 %v295
    %v590 = vunpack.c.l.b16 %v296
    %v591 = vunpack.c.h.b16 %v296
    %v592 = vunpack.c.l.b16 %v297
    %v593 = vunpack.c.h.b16 %v297
    %v594 = vunpack.c.l.b16 %v298
    %v595 = vunpack.c.l.b16 %v299
    %v596 = vunpack.c.h.b16 %v299
    %v597 = vunpack.c.l.b16 %v300
    %v598 = vunpack.c.h.b16 %v300
    %v599 = vunpack.c.l.b16 %v301
    %v600 = vunpack.c.h.b16 %v301
    %v601 = vunpack.c.l.b16 %v302
    %v602 = vunpack.c.l.b16 %v303
    %v603 = vunpack.c.h.b16 %v303
    %v604 = vunpack.c.l.b16 %v304
    %v605 = vunpack.c.h.b16 %v304
    %v606 = vunpack.c.l.b16 %v305
    %v607 = vunpack.c.h.b16 %v305
    %v608 = vunpack.c.l.b16 %v306
    %v609 = vunpack.c.l.b16 %v307
    %v610 = vunpack.c.h.b16 %v307
    %v611 = vunpack.c.l.b16 %v308
    %v612 = vunpack.c.h.b16 %v308
    %v613 = vunpack.c.l.b16 %v309
    %v614 = vunpack.c.h.b16 %v309
    %v615 = vunpack.c.l.b16 %v310
    %v616 = vunpack.c.l.b16 %v311
    %v617 = vunpack.c.h.b16 %v311
    %v618 = vunpack.c.l.b16 %v312
    %v619 = vunpack.c.h.b16 %v312
    %v620 = vunpack.c.l.b16 %v313
    %v621 = vunpack.c.h.b16 %v313
    %v622 = vunpack.c.l.b16 %v314
    %v623 = vunpack.c.l.b16 %v315
    %v624 = vunpack.c.h.b16 %v315
    %v625 = vunpack.c.l.b16 %v316
    %v626 = vunpack.c.h.b16 %v316
    %v627 = vunpack.c.l.b16 %v317
    %v628 = vunpack.c.h.b16 %v317
    %v629 = vunpack.c.l.b16 %v318
    %v630 = vunpack.c.l.b16 %v319
    %v631 = vunpack.c.h.b16 %v319
    %v632 = vunpack.c.l.b16 %v320
    %v633 = vunpack.c.h.b16 %v320
    %v634 = vunpack.c.l.b16 %v321
    %v635 = vunpack.c.h.b16 %v321
    %v636 = vunpack.c.l.b16 %v322
    %v637 = vunpack.c.l.b16 %v323
    %v638 = vunpack.c.h.b16 %v323
    %v639 = vunpack.c.l.b16 %v324
    %v640 = vunpack.c.h.b16 %v324
    %v641 = vunpack.c.l.b16 %v325
    %v642 = vunpack.c.h.b16 %v325
    %v643 = vunpack.c.l.b16 %v326
    %v644 = vunpack.c.l.b16 %v327
    %v645 = vunpack.c.h.b16 %v327
    %v646 = vunpack.c.l.b16 %v328
    %v647 = vunpack.c.h.b16 %v328
    %v648 = vunpack.c.l.b16 %v329
    %v649 = vunpack.c.h.b16 %v329
    %v650 = vunpack.c.l.b16 %v330
    %v651 = vunpack.c.l.b16 %v331
    %v652 = vunpack.c.h.b16 %v331
    %v653 = vunpack.c.l.b16 %v332
    %v654 = vunpack.c.h.b16 %v332
    %v655 = vunpack.c.l.b16 %v333
    %v656 = vunpack.c.h.b16 %v333
    %v657 = vunpack.c.l.b16 %v334
    %v658 = vunpack.c.l.b16 %v335
    %v659 = vunpack.c.h.b16 %v335
    %v660 = vunpack.c.l.b16 %v336
    %v661 = vunpack.c.h.b16 %v336
    %v662 = vunpack.c.l.b16 %v337
    %v663 = vunpack.c.h.b16 %v337
    %v664 = vunpack.c.l.b16 %v338
    %v665 = vunpack.c.l.b16 %v339
    %v666 = vunpack.c.h.b16 %v339
    %v667 = vunpack.c.l.b16 %v340
    %v668 = vunpack.c.h.b16 %v340
    %v669 = vunpack.c.l.b16 %v341
    %v670 = vunpack.c.h.b16 %v341
    %v671 = vunpack.c.l.b16 %v342
    %v672 = vunpack.c.l.b16 %v343
    %v673 = vunpack.c.h.b16 %v343
    %v674 = vunpack.c.l.b16 %v344
    %v675 = vunpack.c.h.b16 %v344
    %v676 = vunpack.c.l.b16 %v345
    %v677 = vunpack.c.h.b16 %v345
    %v678 = vunpack.c.l.b16 %v346
    %v679 = vunpack.c.l.b16 %v347
    %v680 = vunpack.c.h.b16 %v347
    %v681 = vunpack.c.l.b16 %v348
    %v682 = vunpack.c.h.b16 %v348
    %v683 = vunpack.c.l.b16 %v349
    %v684 = vunpack.c.h.b16 %v349
    %v685 = vunpack.c.l.b16 %v350
    %v686 = vunpack.c.l.b16 %v351
    %v687 = vunpack.c.h.b16 %v351
    %v688 = vunpack.c.l.b16 %v352
    %v689 = vunpack.c.h.b16 %v352
    %v690 = vunpack.c.l.b16 %v353
    %v691 = vunpack.c.h.b16 %v353
    %v692 = vunpack.c.l.b16 %v354
    %v693 = vunpack.c.l.b16 %v355
    %v694 = vunpack.c.h.b16 %v355
    %v695 = vunpack.c.l.b16 %v356
    %v696 = vunpack.c.h.b16 %v356
    %v697 = vunpack.c.l.b16 %v357
    %v698 = vunpack.c.h.b16 %v357
    %v699 = vunpack.c.l.b16 %v358
    %v700 = vunpack.c.l.b16 %v359
    %v701 = vunpack.c.h.b16 %v359
    %v702 = vunpack.c.l.b16 %v360
    %v703 = vunpack.c.h.b16 %v360
    %v704 = vunpack.c.l.b16 %v361
    %v705 = vunpack.c.h.b16 %v361
    %v706 = vunpack.c.l.b16 %v362
    %v707 = vunpack.c.l.b16 %v363
    %v708 = vunpack.c.h.b16 %v363
    %v709 = vunpack.c.l.b16 %v364
    %v710 = vunpack.c.h.b16 %v364
    %v711 = vunpack.c.l.b16 %v365
    %v712 = vunpack.c.h.b16 %v365
    %v713 = vunpack.c.l.b16 %v366
    %v714 = vunpack.c.l.b16 %v367
    %v715 = vunpack.c.h.b16 %v367
    %v716 = vunpack.c.l.b16 %v368
    %v717 = vunpack.c.h.b16 %v368
    %v718 = vunpack.c.l.b16 %v369
    %v719 = vunpack.c.h.b16 %v369
    %v720 = vunpack.c.l.b16 %v370
    %v721 = vunpack.c.l.b16 %v371
    %v722 = vunpack.c.h.b16 %v371
    %v723 = vunpack.c.l.b16 %v372
    %v724 = vunpack.c.h.b16 %v372
    %v725 = vunpack.c.l.b16 %v373
    %v726 = vunpack.c.h.b16 %v373
    %v727 = vunpack.c.l.b16 %v374
    %v728 = vunpack.c.l.b16 %v375
    %v729 = vunpack.c.h.b16 %v375
    %v730 = vunpack.c.l.b16 %v376
    %v731 = vunpack.c.h.b16 %v376
    %v732 = vunpack.c.l.b16 %v377
    %v733 = vunpack.c.h.b16 %v377
    %v734 = vunpack.c.l.b16 %v378
    %v735 = vunpack.c.l.b16 %v379
    %v736 = vunpack.c.h.b16 %v379
    %v737 = vunpack.c.l.b16 %v380
    %v738 = vunpack.c.h.b16 %v380
    %v739 = vunpack.c.l.b16 %v381
    %v740 = vunpack.c.h.b16 %v381
    %v741 = vunpack.c.l.b16 %v382
    %v742 = vunpack.c.l.b16 %v383
    %v743 = vunpack.c.h.b16 %v383
    %v744 = vunpack.c.l.b16 %v384
    %v745 = vunpack.c.h.b16 %v384
    %v746 = vunpack.c.l.b16 %v385
    %v747 = vunpack.c.h.b16 %v385
    %v748 = vunpack.c.l.b16 %v386
    %v749 = vunpack.c.l.b16 %v387
    %v750 = vunpack.c.h.b16 %v387
    %v751 = vunpack.c.l.b16 %v388
    %v752 = vunpack.c.h.b16 %v388
    %v753 = vunpack.c.l.b16 %v389
    %v754 = vunpack.c.h.b16 %v389
    %v755 = vunpack.c.l.b16 %v390
    %v756 = vunpack.c.l.b16 %v391
    %v757 = vunpack.c.h.b16 %v391
    %v758 = vunpack.c.l.b16 %v392
    %v759 = vunpack.c.h.b16 %v392
    %v760 = vunpack.c.l.b16 %v393
    %v761 = vunpack.c.h.b16 %v393
    %v762 = vunpack.c.l.b16 %v394
    %v763 = vunpack.c.l.b16 %v395
    %v764 = vunpack.c.h.b16 %v395
    %v765 = vunpack.c.l.b16 %v396
    %v766 = vunpack.c.h.b16 %v396
    %v767 = vunpack.c.l.b16 %v397
    %v768 = vunpack.c.h.b16 %v397
    %v769 = vunpack.c.l.b16 %v398
    %v770 = vunpack.c.l.b16 %v399
    %v771 = vunpack.c.h.b16 %v399
    %v772 = vunpack.c.l.b16 %v400
    %v773 = vunpack.c.h.b16 %v400
    %v774 = vunpack.c.l.b16 %v401
    %v775 = vunpack.c.h.b16 %v401
    %v776 = vunpack.c.l.b16 %v402
    %v777 = vunpack.c.l.b16 %v403
    %v778 = vunpack.c.h.b16 %v403
    %v779 = vunpack.c.l.b16 %v404
    %v780 = vunpack.c.h.b16 %v404
    %v781 = vunpack.c.l.b16 %v405
    %v782 = vunpack.c.h.b16 %v405
    %v783 = vunpack.c.l.b16 %v406
    %v784 = vunpack.c.l.b16 %v407
    %v785 = vunpack.c.h.b16 %v407
    %v786 = vunpack.c.l.b16 %v408
    %v787 = vunpack.c.h.b16 %v408
    %v788 = vunpack.c.l.b16 %v409
    %v789 = vunpack.c.h.b16 %v409
    %v790 = vunpack.c.l.b16 %v410
    %v791 = vunpack.c.l.b16 %v411
    %v792 = vunpack.c.h.b16 %v411
    %v793 = vunpack.c.l.b16 %v412
    %v794 = vunpack.c.h.b16 %v412
    %v795 = vunpack.c.l.b16 %v413
    %v796 = vunpack.c.h.b16 %v413
    %v797 = vunpack.c.l.b16 %v414
    %v798 = vunpack.c.l.b16 %v415
    %v799 = vunpack.c.h.b16 %v415
    %v800 = vunpack.c.l.b16 %v416
    %v801 = vunpack.c.h.b16 %v416
    %v802 = vunpack.c.l.b16 %v417
    %v803 = vunpack.c.h.b16 %v417
    %v804 = vunpack.c.l.b16 %v418
    %v805 = vunpack.c.l.b16 %v419
    %v806 = vunpack.c.h.b16 %v419
    %v807 = vunpack.c.l.b16 %v420
    %v808 = vunpack.c.h.b16 %v420
    %v809 = vunpack.c.l.b16 %v421
    %v810 = vunpack.c.h.b16 %v421
    %v811 = vunpack.c.l.b16 %v422
    %v812 = vpack.c.b16 %v595, %v588
    %v813 = vpack.c.b16 %v596, %v589
    %v814 = vpack.c.b16 %v597, %v590
    %v815 = vpack.c.b16 %v598, %v591
    %v816 = vpack.c.b16 %v599, %v592
    %v817 = vpack.c.b16 %v600, %v593
    %v818 = vpack.c.b16 %v601, %v594
    %v819 = vpack.c.b16 %v609, %v602
    %v820 = vpack.c.b16 %v610, %v603
    %v821 = vpack.c.b16 %v611, %v604
    %v822 = vpack.c.b16 %v612, %v605
    %v823 = vpack.c.b16 %v613, %v606
    %v824 = vpack.c.b16 %v614, %v607
    %v825 = vpack.c.b16 %v615, %v608
    %v826 = vpack.c.b16 %v623, %v616
    %v827 = vpack.c.b16 %v624, %v617
    %v828 = vpack.c.b16 %v625, %v618
    %v829 = vpack.c.b16 %v626, %v619
    %v830 = vpack.c.b16 %v627, %v620
    %v831 = vpack.c.b16 %v628, %v621
    %v832 = vpack.c.b16 %v629, %v622
    %v833 = vpack.c.b16 %v637, %v630
    %v834 = vpack.c.b16 %v638, %v631
    %v835 = vpack.c.b16 %v639, %v632
    %v836 = vpack.c.b16 %v640, %v633
    %v837 = vpack.c.b16 %v641, %v634
    %v838 = vpack.c.b16 %v642, %v635
    %v839 = vpack.c.b16 %v643, %v636
    %v840 = vpack.c.b16 %v651, %v644
    %v841 = vpack.c.b16 %v652, %v645
    %v842 = vpack.c.b16 %v653, %v646
    %v843 = vpack.c.b16 %v654, %v647
    %v844 = vpack.c.b16 %v655, %v648
    %v845 = vpack.c.b16 %v656, %v649
    %v846 = vpack.c.b16 %v657, %v650
    %v847 = vpack.c.b16 %v665, %v658
    %v848 = vpack.c.b16 %v666, %v659
    %v849 = vpack.c.b16 %v667, %v660
    %v850 = vpack.c.b16 %v668, %v661
    %v851 = vpack.c.b16 %v669, %v662
    %v852 = vpack.c.b16 %v670, %v663
    %v853 = vpack.c.b16 %v671, %v664
    %v854 = vpack.c.b16 %v679, %v672
    %v855 = vpack.c.b16 %v680, %v673
    %v856 = vpack.c.b16 %v681, %v674
    %v857 = vpack.c.b16 %v682, %v675
    %v858 = vpack.c.b16 %v683, %v676
    %v859 = vpack.c.b16 %v684, %v677
    %v860 = vpack.c.b16 %v685, %v678
    %v861 = vpack.c.b16 %v693, %v686
    %v862 = vpack.c.b16 %v694, %v687
    %v863 = vpack.c.b16 %v695, %v688
    %v864 = vpack.c.b16 %v696, %v689
    %v865 = vpack.c.b16 %v697, %v690
    %v866 = vpack.c.b16 %v698, %v691
    %v867 = vpack.c.b16 %v699, %v692
    %v868 = vpack.c.b16 %v707, %v700
    %v869 = vpack.c.b16 %v708, %v701
    %v870 = vpack.c.b16 %v709, %v702
    %v871 = vpack.c.b16 %v710, %v703
    %v872 = vpack.c.b16 %v711, %v704
    %v873 = vpack.c.b16 %v712, %v705
    %v874 = vpack.c.b16 %v713, %v706
    %v875 = vpack.c.b16 %v721, %v714
    %v876 = vpack.c.b16 %v722, %v715
    %v877 = vpack.c.b16 %v723, %v716
    %v878 = vpack.c.b16 %v724, %v717
    %v879 = vpack.c.b16 %v725, %v718
    %v880 = vpack.c.b16 %v726, %v719
    %v881 = vpack.c.b16 %v727, %v720
    %v882 = vpack.c.b16 %v735, %v728
    %v883 = vpack.c.b16 %v736, %v729
    %v884 = vpack.c.b16 %v737, %v730
    %v885 = vpack.c.b16 %v738, %v731
    %v886 = vpack.c.b16 %v739, %v732
    %v887 = vpack.c.b16 %v740, %v733
    %v888 = vpack.c.b16 %v741, %v734
    %v889 = vpack.c.b16 %v749, %v742
    %v890 = vpack.c.b16 %v750, %v743
    %v891 = vpack.c.b16 %v751, %v744
    %v892 = vpack.c.b16 %v752, %v745
    %v893 = vpack.c.b16 %v753, %v746
    %v894 = vpack.c.b16 %v754, %v747
    %v895 = vpack.c.b16 %v755, %v748
    %v896 = vpack.c.b16 %v763, %v756
    %v897 = vpack.c.b16 %v764, %v757
    %v898 = vpack.c.b16 %v765, %v758
    %v899 = vpack.c.b16 %v766, %v759
    %v900 = vpack.c.b16 %v767, %v760
    %v901 = vpack.c.b16 %v768, %v761
    %v902 = vpack.c.b16 %v769, %v762
    %v903 = vpack.c.b16 %v777, %v770
    %v904 = vpack.c.b16 %v778, %v771
    %v905 = vpack.c.b16 %v779, %v772
    %v906 = vpack.c.b16 %v780, %v773
    %v907 = vpack.c.b16 %v781, %v774
    %v908 = vpack.c.b16 %v782, %v775
    %v909 = vpack.c.b16 %v783, %v776
    %v910 = vpack.c.b16 %v791, %v784
    %v911 = vpack.c.b16 %v792, %v785
    %v912 = vpack.c.b16 %v793, %v786
    %v913 = vpack.c.b16 %v794, %v787
    %v914 = vpack.c.b16 %v795, %v788
    %v915 = vpack.c.b16 %v796, %v789
    %v916 = vpack.c.b16 %v797, %v790
    %v917 = vpack.c.b16 %v805, %v798
    %v918 = vpack.c.b16 %v806, %v799
    %v919 = vpack.c.b16 %v807, %v800
    %v920 = vpack.c.b16 %v808, %v801
    %v921 = vpack.c.b16 %v809, %v802
    %v922 = vpack.c.b16 %v810, %v803
    %v923 = vpack.c.b16 %v811, %v804
    %1036 = vmatprep.subr.bf16.mxu0 %v813
    %1037 = vmatpush1.bf16.msra.mxu0 %v812
    %1038 = vmatprep.subr.bf16.mxu0 %v820
    %1039 = vmatpush1.bf16.msra.mxu0 %v819
    %1040 = vmatprep.subr.bf16.mxu0 %v827
    %1041 = vmatpush1.bf16.msra.mxu0 %v826
    %1042 = vmatprep.subr.bf16.mxu0 %v834
    %1043 = vmatpush1.bf16.msra.mxu0 %v833
    %1044 = vmatprep.subr.bf16.mxu0 %v841
    %1045 = vmatpush1.bf16.msra.mxu0 %v840
    %1046 = vmatprep.subr.bf16.mxu0 %v848
    %1047 = vmatpush1.bf16.msra.mxu0 %v847
    %1048 = vmatprep.subr.bf16.mxu0 %v855
    %1049 = vmatpush1.bf16.msra.mxu0 %v854
    %1050 = vmatprep.subr.bf16.mxu0 %v862
    %1051 = vmatpush1.bf16.msra.mxu0 %v861
    %1052 = vmatprep.subr.bf16.mxu0 %v869
    %1053 = vmatpush1.bf16.msra.mxu0 %v868
    %1054 = vmatprep.subr.bf16.mxu0 %v876
    %1055 = vmatpush1.bf16.msra.mxu0 %v875
    %1056 = vmatprep.subr.bf16.mxu0 %v883
    %1057 = vmatpush1.bf16.msra.mxu0 %v882
    %1058 = vmatprep.subr.bf16.mxu0 %v890
    %1059 = vmatpush1.bf16.msra.mxu0 %v889
    %1060 = vmatprep.subr.bf16.mxu0 %v897
    %1061 = vmatpush1.bf16.msra.mxu0 %v896
    %1062 = vmatprep.subr.bf16.mxu0 %v904
    %1063 = vmatpush1.bf16.msra.mxu0 %v903
    %1064 = vmatprep.subr.bf16.mxu0 %v911
    %1065 = vmatpush1.bf16.msra.mxu0 %v910
    %1066 = vmatprep.subr.bf16.mxu0 %v918
    %1067 = vmatpush1.bf16.msra.mxu0 %v917
    %1068 = vmatprep.mubr.bf16.mxu0 %v294
    %1069 = vmatmul.mubr.bf16.gmra.mrb[0].mxu0 %v293
    %v1070 = vpop.f32.mrb[0].mxu0
    %v1071 = vadd.f32 %v428, %v1070
    %v1072 = vpop.f32.mrb[0].mxu0
    %v1073 = vadd.f32 %v432, %v1072
    %v1074 = vpop.f32.mrb[0].mxu0
    %v1075 = vpop.f32.mrb[0].mxu0
    %1076 = vdwg.mxu0
    %1077 = vmatprep.subr.bf16.mxu0 %v815
    %1078 = vmatpush1.bf16.msra.mxu0 %v814
    %1079 = vmatprep.subr.bf16.mxu0 %v822
    %1080 = vmatpush1.bf16.msra.mxu0 %v821
    %1081 = vmatprep.subr.bf16.mxu0 %v829
    %1082 = vmatpush1.bf16.msra.mxu0 %v828
    %1083 = vmatprep.subr.bf16.mxu0 %v836
    %1084 = vmatpush1.bf16.msra.mxu0 %v835
    %1085 = vmatprep.subr.bf16.mxu0 %v843
    %1086 = vmatpush1.bf16.msra.mxu0 %v842
    %1087 = vmatprep.subr.bf16.mxu0 %v850
    %1088 = vmatpush1.bf16.msra.mxu0 %v849
    %1089 = vmatprep.subr.bf16.mxu0 %v857
    %1090 = vmatpush1.bf16.msra.mxu0 %v856
    %1091 = vmatprep.subr.bf16.mxu0 %v864
    %1092 = vmatpush1.bf16.msra.mxu0 %v863
    %1093 = vmatprep.subr.bf16.mxu0 %v871
    %1094 = vmatpush1.bf16.msra.mxu0 %v870
    %1095 = vmatprep.subr.bf16.mxu0 %v878
    %1096 = vmatpush1.bf16.msra.mxu0 %v877
    %1097 = vmatprep.subr.bf16.mxu0 %v885
    %1098 = vmatpush1.bf16.msra.mxu0 %v884
    %1099 = vmatprep.subr.bf16.mxu0 %v892
    %1100 = vmatpush1.bf16.msra.mxu0 %v891
    %1101 = vmatprep.subr.bf16.mxu0 %v899
    %1102 = vmatpush1.bf16.msra.mxu0 %v898
    %1103 = vmatprep.subr.bf16.mxu0 %v906
    %1104 = vmatpush1.bf16.msra.mxu0 %v905
    %1105 = vmatprep.subr.bf16.mxu0 %v913
    %1106 = vmatpush1.bf16.msra.mxu0 %v912
    %1107 = vmatprep.subr.bf16.mxu0 %v920
    %1108 = vmatpush1.bf16.msra.mxu0 %v919
    %1109 = vmatprep.mubr.bf16.mxu0 %v294
    %1110 = vmatmul.mubr.bf16.gmra.mrb[0].mxu0 %v293
    %v1111 = vpop.f32.mrb[0].mxu0
    %v1112 = vadd.f32 %v436, %v1111
    %v1113 = vpop.f32.mrb[0].mxu0
    %v1114 = vadd.f32 %v440, %v1113
    %v1115 = vpop.f32.mrb[0].mxu0
    %v1116 = vpop.f32.mrb[0].mxu0
    %1117 = vdwg.mxu0
    %1118 = vmatprep.subr.bf16.mxu0 %v817
    %1119 = vmatpush1.bf16.msra.mxu0 %v816
    %1120 = vmatprep.subr.bf16.mxu0 %v824
    %1121 = vmatpush1.bf16.msra.mxu0 %v823
    %1122 = vmatprep.subr.bf16.mxu0 %v831
    %1123 = vmatpush1.bf16.msra.mxu0 %v830
    %1124 = vmatprep.subr.bf16.mxu0 %v838
    %1125 = vmatpush1.bf16.msra.mxu0 %v837
    %1126 = vmatprep.subr.bf16.mxu0 %v845
    %1127 = vmatpush1.bf16.msra.mxu0 %v844
    %1128 = vmatprep.subr.bf16.mxu0 %v852
    %1129 = vmatpush1.bf16.msra.mxu0 %v851
    %1130 = vmatprep.subr.bf16.mxu0 %v859
    %1131 = vmatpush1.bf16.msra.mxu0 %v858
    %1132 = vmatprep.subr.bf16.mxu0 %v866
    %1133 = vmatpush1.bf16.msra.mxu0 %v865
    %1134 = vmatprep.subr.bf16.mxu0 %v873
    %1135 = vmatpush1.bf16.msra.mxu0 %v872
    %1136 = vmatprep.subr.bf16.mxu0 %v880
    %1137 = vmatpush1.bf16.msra.mxu0 %v879
    %1138 = vmatprep.subr.bf16.mxu0 %v887
    %1139 = vmatpush1.bf16.msra.mxu0 %v886
    %1140 = vmatprep.subr.bf16.mxu0 %v894
    %1141 = vmatpush1.bf16.msra.mxu0 %v893
    %1142 = vmatprep.subr.bf16.mxu0 %v901
    %1143 = vmatpush1.bf16.msra.mxu0 %v900
    %1144 = vmatprep.subr.bf16.mxu0 %v908
    %1145 = vmatpush1.bf16.msra.mxu0 %v907
    %1146 = vmatprep.subr.bf16.mxu0 %v915
    %1147 = vmatpush1.bf16.msra.mxu0 %v914
    %1148 = vmatprep.subr.bf16.mxu0 %v922
    %1149 = vmatpush1.bf16.msra.mxu0 %v921
    %1150 = vmatprep.mubr.bf16.mxu0 %v294
    %1151 = vmatmul.mubr.bf16.gmra.mrb[0].mxu0 %v293
    %v1152 = vpop.f32.mrb[0].mxu0
    %v1153 = vadd.f32 %v444, %v1152
    %v1154 = vpop.f32.mrb[0].mxu0
    %v1155 = vadd.f32 %v448, %v1154
    %v1156 = vpop.f32.mrb[0].mxu0
    %v1157 = vpop.f32.mrb[0].mxu0
    %1158 = vdwg.mxu0
    %1159 = vmatprep.subr.bf16.mxu0 0
    %1160 = vmatpush1.bf16.msra.mxu0 %v818
    %1161 = vmatprep.subr.bf16.mxu0 0
    %1162 = vmatpush1.bf16.msra.mxu0 %v825
    %1163 = vmatprep.subr.bf16.mxu0 0
    %1164 = vmatpush1.bf16.msra.mxu0 %v832
    %1165 = vmatprep.subr.bf16.mxu0 0
    %1166 = vmatpush1.bf16.msra.mxu0 %v839
    %1167 = vmatprep.subr.bf16.mxu0 0
    %1168 = vmatpush1.bf16.msra.mxu0 %v846
    %1169 = vmatprep.subr.bf16.mxu0 0
    %1170 = vmatpush1.bf16.msra.mxu0 %v853
    %1171 = vmatprep.subr.bf16.mxu0 0
    %1172 = vmatpush1.bf16.msra.mxu0 %v860
    %1173 = vmatprep.subr.bf16.mxu0 0
    %1174 = vmatpush1.bf16.msra.mxu0 %v867
    %1175 = vmatprep.subr.bf16.mxu0 0
    %1176 = vmatpush1.bf16.msra.mxu0 %v874
    %1177 = vmatprep.subr.bf16.mxu0 0
    %1178 = vmatpush1.bf16.msra.mxu0 %v881
    %1179 = vmatprep.subr.bf16.mxu0 0
    %1180 = vmatpush1.bf16.msra.mxu0 %v888
    %1181 = vmatprep.subr.bf16.mxu0 0
    %1182 = vmatpush1.bf16.msra.mxu0 %v895
    %1183 = vmatprep.subr.bf16.mxu0 0
    %1184 = vmatpush1.bf16.msra.mxu0 %v902
    %1185 = vmatprep.subr.bf16.mxu0 0
    %1186 = vmatpush1.bf16.msra.mxu0 %v909
    %1187 = vmatprep.subr.bf16.mxu0 0
    %1188 = vmatpush1.bf16.msra.mxu0 %v916
    %1189 = vmatprep.subr.bf16.mxu0 0
    %1190 = vmatpush1.bf16.msra.mxu0 %v923
    %1191 = vmatprep.mubr.bf16.mxu0 %v294
    %1192 = vmatmul.mubr.bf16.gmra.mrb[0].mxu0 %v293
    %v1193 = vpop.f32.mrb[0].mxu0
    %v1194 = vadd.f32 %v452, %v1193
    %v1195 = vpop.f32.mrb[0].mxu0
    %v1196 = vpop.f32.mrb[0].mxu0
    %v1197 = vpop.f32.mrb[0].mxu0
    %1198 = vdwg.mxu0
    %v1199 = vmul.f32 %v1071, 0.5
    %v1200 = vmul.f32 %v1073, 0.5
    %v1201 = vmul.f32 %v1112, 0.5
    %v1202 = vmul.f32 %v1114, 0.5
    %v1203 = vmul.f32 %v1153, 0.5
    %v1204 = vmul.f32 %v1155, 0.5
    %v1205 = vmul.f32 %v1194, 0.5
    %v1206 = vtanh.pop %v1199
    %v1207 = vtanh.pop %v1200
    %v1208 = vtanh.pop %v1201
    %v1209 = vtanh.pop %v1202
    %v1210 = vtanh.pop %v1203
    %v1211 = vtanh.pop %v1204
    %v1212 = vtanh.pop %v1205
    %v1213 = vmul.f32 %v1206, 0.5
    %v1214 = vmul.f32 %v1207, 0.5
    %v1215 = vmul.f32 %v1208, 0.5
    %v1216 = vmul.f32 %v1209, 0.5
    %v1217 = vmul.f32 %v1210, 0.5
    %v1218 = vmul.f32 %v1211, 0.5
    %v1219 = vmul.f32 %v1212, 0.5
    %v1220 = vadd.f32 %v1213, 0.5
    %v1221 = vadd.f32 %v1214, 0.5
    %v1222 = vadd.f32 %v1215, 0.5
    %v1223 = vadd.f32 %v1216, 0.5
    %v1224 = vadd.f32 %v1217, 0.5
    %v1225 = vadd.f32 %v1218, 0.5
    %v1226 = vadd.f32 %v1219, 0.5
    %1227 = vst [vmem:[#allocation2] sm:$0xff] %v1220
    %1228 = vst [vmem:[#allocation2 + $0x8] sm:$0xff] %v1221
    %1229 = vst [vmem:[#allocation2 + $0x10] sm:$0xff] %v1222
    %1230 = vst [vmem:[#allocation2 + $0x18] sm:$0xff] %v1223
    %1231 = vst [vmem:[#allocation2 + $0x20] sm:$0xff] %v1224
    %1232 = vst [vmem:[#allocation2 + $0x28] sm:$0xff] %v1225
    %vm1233 = vcmask 130048
    %1234 = vst.msk [vmem:[#allocation2 + $0x30] sm:$0xff] %vm1233, %v1226
    // Predicated region
    $region30: #{generator_forward.1} parent=1 // pred_check
      _
    $region31: #{generator_forward.1} parent=1 // pred_check_branch
      %1236 = sbr.rel (0) target = $region33
    $region32: #{generator_forward.1} parent=1 // pred_region
      %s1238 = ssub.s32 896, 896
      %1239 = vsyncadd [#allocation3], %s1238
      %s1241 = sshll.u32 [#allocation2], 4
      %s1242 = int_to_ptr.vmem [resolvable:$true] %s1241
      %1244 = dma.vmem_to_hbm [thread:$0]  %s1242, 896, %s7, [#allocation3]
    $region33: #{generator_forward.1} parent=1 // pred_fallthru
      _
    // Predicated region
    $region34: #{generator_forward.1} parent=1 // pred_check
      _
    $region35: #{generator_forward.1} parent=1 // pred_check_branch
      %1246 = sbr.rel (0) target = $region37
    $region36: #{generator_forward.1} parent=1 // pred_region
      %1247 = dma.done [#allocation3], 896
    $region37: #{generator_forward.1} parent=1 // pred_fallthru
      _
    %1248 = vsyncpa [#allocation3], 1

</llo_original>
